<compile_context>
chip_gen: v7x
topology: tpu7x:2x2x1
jax: 0.10.0
libtpu: 0.0.40
codegen_flags: <defaults>
</compile_context>

<pallas_src>
import functools

import jax
import jax.numpy as jnp
from jax.experimental import pallas as pl
from jax.experimental.pallas import tpu as pltpu

_COLS = 128
_SMALL_MAX_ELEMS = 256 * 1024          # ~1 MiB f32 slab -> single-block path
_VMEM_LIMIT = 32 * 1024 * 1024


def _normalize(x, s, ss, n_f):
    """(x - mean) / std with unbiased variance from fused sum / sum-of-squares."""
    mean = s / n_f
    var = (ss - n_f * mean * mean) / (n_f - 1.0)   # n == 1 -> inf/NaN, matches torch
    return (x - mean) * jax.lax.rsqrt(var)


def _double_bump(data, coeff):
    """sigmoid via tanh (one EUP op), then coeff*v*(1-v) applied twice."""
    v = 0.5 * (jnp.tanh(0.5 * data) + 1.0)
    v = coeff * v * (1.0 - v)
    v = coeff * v * (1.0 - v)
    return v


def _tail_mask(shape, base, n):
    # NOTE: int32 flat index; fine for n < 2^31 elements.
    rows, cols = shape
    flat = (jax.lax.broadcasted_iota(jnp.int32, (rows, cols), 0) * cols
            + jax.lax.broadcasted_iota(jnp.int32, (rows, cols), 1) + base)
    return flat < n


# --------------------------------------------------------------------------
# Small path: whole (R, 128) slab resident in VMEM, grid-less.
# --------------------------------------------------------------------------
def _optaeg_v2_small_kernel(params_ref, x_ref, o_ref, *, n, aligned):
    coeff = params_ref[0]
    afactor = params_ref[1]
    mfactor = params_ref[2]
    n_f = jnp.float32(n)

    x = x_ref[...].astype(jnp.float32)

    # Zero padding (if any) contributes nothing to sum / sum-of-squares of x,
    # so no mask is needed here; divide by the true element count n.
    data = _normalize(x, jnp.sum(x), jnp.sum(x * x), n_f)

    value = _double_bump(data, coeff)

    if aligned:
        vm = value
    else:
        vm = jnp.where(_tail_mask(value.shape, 0, n), value, 0.0)
    value = _normalize(value, jnp.sum(vm), jnp.sum(vm * vm), n_f)

    dx = afactor * jnp.tanh(value)
    dy = mfactor * jnp.tanh(data)
    # Padded tail is garbage here; the wrapper slices [:n], so no output mask.
    o_ref[...] = (data * (1.0 + dy) + dx).astype(o_ref.dtype)


# --------------------------------------------------------------------------
# Gridded path: grid = (3 passes, num_tiles), tiles auto-pipelined.
# --------------------------------------------------------------------------
def _optaeg_v2_grid_kernel(params_ref, x_ref, o_ref,
                           sx_ref, sxx_ref, sv_ref, svv_ref,
                           *, n, tile_elems, aligned):
    p = pl.program_id(0)
    t = pl.program_id(1)

    coeff = params_ref[0]
    afactor = params_ref[1]
    mfactor = params_ref[2]
    n_f = jnp.float32(n)

    x = x_ref[...].astype(jnp.float32)

    @pl.when(jnp.logical_and(p == 0, t == 0))
    def _():
        sx_ref[...] = jnp.zeros_like(sx_ref)
        sxx_ref[...] = jnp.zeros_like(sxx_ref)
        sv_ref[...] = jnp.zeros_like(sv_ref)
        svv_ref[...] = jnp.zeros_like(svv_ref)

    @pl.when(p == 0)
    def _():
        # Zero padding contributes nothing to either sum.
        sx_ref[...] = sx_ref[...] + jnp.sum(x)
        sxx_ref[...] = sxx_ref[...] + jnp.sum(x * x)

    @pl.when(p == 1)
    def _():
        data = _normalize(x, sx_ref[...], sxx_ref[...], n_f)
        value = _double_bump(data, coeff)
        if not aligned:
            value = jnp.where(_tail_mask(value.shape, t * tile_elems, n),
                              value, 0.0)
        sv_ref[...] = sv_ref[...] + jnp.sum(value)
        svv_ref[...] = svv_ref[...] + jnp.sum(value * value)

    @pl.when(p == 2)
    def _():
        data = _normalize(x, sx_ref[...], sxx_ref[...], n_f)
        value = _double_bump(data, coeff)
        value = _normalize(value, sv_ref[...], svv_ref[...], n_f)
        dx = afactor * jnp.tanh(value)
        dy = mfactor * jnp.tanh(data)
        o_ref[...] = (data * (1.0 + dy) + dx).astype(o_ref.dtype)


# --------------------------------------------------------------------------
# Wrapper
# --------------------------------------------------------------------------
def optaeg_v2(x, coeff, afactor, mfactor, *, block_rows=512, force_grid=False):
    """Pallas implementation of OptAEGV2.forward. x: any shape (e.g. NCHW)."""
    orig_shape = x.shape
    orig_dtype = x.dtype
    flat = jnp.ravel(x)                      # keep native dtype (DMA savings)
    n = flat.shape[0]

    params = jnp.array([coeff, afactor, mfactor], dtype=jnp.float32)

    if n <= _SMALL_MAX_ELEMS and not force_grid:
        rows = pl.cdiv(pl.cdiv(n, _COLS), 8) * 8
        total = rows * _COLS
        aligned = total == n
        padded = flat if aligned else jnp.pad(flat, (0, total - n))
        out = pl.pallas_call(
            functools.partial(_optaeg_v2_small_kernel, n=n, aligned=aligned),
            out_shape=jax.ShapeDtypeStruct((rows, _COLS), orig_dtype),
            in_specs=[pl.BlockSpec(memory_space=pltpu.SMEM),    # [coeff, a, m]
                      pl.BlockSpec(memory_space=pltpu.VMEM)],   # data slab
            out_specs=pl.BlockSpec(memory_space=pltpu.VMEM),
            compiler_params=pltpu.CompilerParams(vmem_limit_bytes=_VMEM_LIMIT),
        )(params, padded.reshape(rows, _COLS))
    else:
        tr = max(8, (block_rows // 8) * 8)           # rows per tile, mult of 8
        rows = pl.cdiv(pl.cdiv(n, _COLS), tr) * tr
        total = rows * _COLS
        aligned = total == n
        padded = flat if aligned else jnp.pad(flat, (0, total - n))
        num_tiles = rows // tr

        grid_spec = pltpu.PrefetchScalarGridSpec(
            num_scalar_prefetch=1,                   # params -> SMEM
            grid=(3, num_tiles),                     # (pass, tile); tile inner
            in_specs=[pl.BlockSpec((tr, _COLS), lambda p, t, prm: (t, 0))],
            out_specs=pl.BlockSpec((tr, _COLS), lambda p, t, prm: (t, 0)),
            scratch_shapes=[pltpu.VMEM((1, 1), jnp.float32)] * 4,
        )
        out = pl.pallas_call(
            functools.partial(_optaeg_v2_grid_kernel, n=n,
                              tile_elems=tr * _COLS, aligned=aligned),
            out_shape=jax.ShapeDtypeStruct((rows, _COLS), orig_dtype),
            grid_spec=grid_spec,
            compiler_params=pltpu.CompilerParams(
                dimension_semantics=("arbitrary", "arbitrary"),
                vmem_limit_bytes=_VMEM_LIMIT),
        )(params, padded.reshape(rows, _COLS))

    return out.reshape(-1)[:n].reshape(orig_shape)


# --------------------------------------------------------------------------
# Pure-JAX reference mirroring the PyTorch forward (unbiased std, two-pass).
# --------------------------------------------------------------------------
def _reference(x, coeff, afactor, mfactor):
    shape = x.shape
    d = jnp.ravel(x).astype(jnp.float32)
    d = d - jnp.mean(d)
    d = d / jnp.std(d, ddof=1)
    v = jax.nn.sigmoid(d)
    v = coeff * v * (1.0 - v)
    v = coeff * v * (1.0 - v)
    v = v - jnp.mean(v)
    v = v / jnp.std(v, ddof=1)
    dx = afactor * jnp.tanh(v)
    dy = mfactor * jnp.tanh(d)
    d = d * (1.0 + dy) + dx
    return d.reshape(shape).astype(x.dtype)


if __name__ == "__main__":
    key = jax.random.PRNGKey(0)
    # NCHW input, as the module is used on conv feature maps.
    x = jax.random.normal(key, (2, 4, 16, 16), dtype=jnp.float32)

    # 1) module-init parameters (coeff=1, afactor=0, mfactor=1), aligned path.
    y = optaeg_v2(x, 1.0, 0.0, 1.0)
    y = jax.block_until_ready(y)
    y_ref = _reference(x, 1.0, 0.0, 1.0)
    assert y.shape == x.shape and y.dtype == x.dtype
    assert jnp.allclose(y, y_ref, atol=1e-5, rtol=1e-5)

    # 2) non-trivial parameters exercise the value-normalization branch
    #    (fused sum/sumsq variance -> slightly looser tolerance).
    y2 = optaeg_v2(x, 1.3, 0.125, 0.9)
    y2_ref = _reference(x, 1.3, 0.125, 0.9)
    assert jnp.allclose(y2, y2_ref, atol=1e-4, rtol=1e-4)

    # 3) unaligned size -> masked small path.
    xu = jax.random.normal(jax.random.PRNGKey(0), (3, 5, 7, 11), dtype=jnp.float32)
    yu = optaeg_v2(xu, 1.3, 0.125, 0.9)
    yu_ref = _reference(xu, 1.3, 0.125, 0.9)
    assert jnp.allclose(yu, yu_ref, atol=1e-4, rtol=1e-4)

    # 4) gridded 3-pass path, forced with small tiles so the grid iterates.
    yg = optaeg_v2(x, 1.3, 0.125, 0.9, force_grid=True, block_rows=8)
    assert jnp.allclose(yg, y2_ref, atol=1e-4, rtol=1e-4)

    # 5) gridded path with an unaligned size (masked value reduction).
    yug = optaeg_v2(xu, 1.3, 0.125, 0.9, force_grid=True, block_rows=8)
    yug = jax.block_until_ready(yug)
    assert jnp.allclose(yug, yu_ref, atol=1e-4, rtol=1e-4)

    print("KERNEL_OK")
</pallas_src>

<mosaic_0001>
module attributes {stable_mosaic.version = 11 : i64} {
  func.func @_optaeg_v2_small_kernel(%arg0: memref<3xf32, #tpu.memory_space<smem>>, %arg1: memref<16x128xf32, #tpu.memory_space<vmem>>, %arg2: memref<16x128xf32, #tpu.memory_space<vmem>>) attributes {dimension_semantics = [], scalar_prefetch = 0 : i64, scratch_operands = 0 : i64, tpu.core_type = #tpu.core_type<tc>} {
    %c0 = arith.constant 0 : index
    %0 = memref.load %arg0[%c0] : memref<3xf32, #tpu.memory_space<smem>>
    %c1 = arith.constant 1 : index
    %1 = memref.load %arg0[%c1] : memref<3xf32, #tpu.memory_space<smem>>
    %c2 = arith.constant 2 : index
    %2 = memref.load %arg0[%c2] : memref<3xf32, #tpu.memory_space<smem>>
    %c0_0 = arith.constant 0 : index
    %c0_1 = arith.constant 0 : index
    %3 = vector.load %arg1[%c0_0, %c0_1] : memref<16x128xf32, #tpu.memory_space<vmem>>, vector<16x128xf32>
    %4 = vector.shape_cast %3 : vector<16x128xf32> to vector<1x16x128xf32>
    %cst = arith.constant dense<0.000000e+00> : vector<1xf32>
    %5 = vector.multi_reduction <add>, %4, %cst [1, 2] : vector<1x16x128xf32> to vector<1xf32>
    %6 = vector.shape_cast %5 : vector<1xf32> to vector<1x1x1xf32>
    %7 = vector.extract %6[0, 0, 0] : f32 from vector<1x1x1xf32>
    %8 = arith.mulf %3, %3 : vector<16x128xf32>
    %9 = vector.shape_cast %8 : vector<16x128xf32> to vector<1x16x128xf32>
    %cst_2 = arith.constant dense<0.000000e+00> : vector<1xf32>
    %10 = vector.multi_reduction <add>, %9, %cst_2 [1, 2] : vector<1x16x128xf32> to vector<1xf32>
    %11 = vector.shape_cast %10 : vector<1xf32> to vector<1x1x1xf32>
    %12 = vector.extract %11[0, 0, 0] : f32 from vector<1x1x1xf32>
    %cst_3 = arith.constant 2.048000e+03 : f32
    %13 = arith.divf %7, %cst_3 : f32
    %cst_4 = arith.constant 2.048000e+03 : f32
    %14 = arith.mulf %cst_4, %13 : f32
    %15 = arith.mulf %14, %13 : f32
    %16 = arith.subf %12, %15 : f32
    %cst_5 = arith.constant 2.048000e+03 : f32
    %cst_6 = arith.constant 1.000000e+00 : f32
    %17 = arith.subf %cst_5, %cst_6 : f32
    %18 = arith.divf %16, %17 : f32
    %19 = vector.broadcast %13 : f32 to vector<16x128xf32>
    %20 = arith.subf %3, %19 : vector<16x128xf32>
    %21 = math.rsqrt %18 : f32
    %22 = vector.broadcast %21 : f32 to vector<16x128xf32>
    %23 = arith.mulf %20, %22 : vector<16x128xf32>
    %cst_7 = arith.constant 5.000000e-01 : f32
    %24 = vector.broadcast %cst_7 : f32 to vector<16x128xf32>
    %25 = arith.mulf %24, %23 : vector<16x128xf32>
    %26 = math.tanh %25 : vector<16x128xf32>
    %cst_8 = arith.constant 1.000000e+00 : f32
    %27 = vector.broadcast %cst_8 : f32 to vector<16x128xf32>
    %28 = arith.addf %26, %27 : vector<16x128xf32>
    %cst_9 = arith.constant 5.000000e-01 : f32
    %29 = vector.broadcast %cst_9 : f32 to vector<16x128xf32>
    %30 = arith.mulf %29, %28 : vector<16x128xf32>
    %31 = vector.broadcast %0 : f32 to vector<16x128xf32>
    %32 = arith.mulf %31, %30 : vector<16x128xf32>
    %cst_10 = arith.constant 1.000000e+00 : f32
    %33 = vector.broadcast %cst_10 : f32 to vector<16x128xf32>
    %34 = arith.subf %33, %30 : vector<16x128xf32>
    %35 = arith.mulf %32, %34 : vector<16x128xf32>
    %36 = vector.broadcast %0 : f32 to vector<16x128xf32>
    %37 = arith.mulf %36, %35 : vector<16x128xf32>
    %cst_11 = arith.constant 1.000000e+00 : f32
    %38 = vector.broadcast %cst_11 : f32 to vector<16x128xf32>
    %39 = arith.subf %38, %35 : vector<16x128xf32>
    %40 = arith.mulf %37, %39 : vector<16x128xf32>
    %41 = vector.shape_cast %40 : vector<16x128xf32> to vector<1x16x128xf32>
    %cst_12 = arith.constant dense<0.000000e+00> : vector<1xf32>
    %42 = vector.multi_reduction <add>, %41, %cst_12 [1, 2] : vector<1x16x128xf32> to vector<1xf32>
    %43 = vector.shape_cast %42 : vector<1xf32> to vector<1x1x1xf32>
    %44 = vector.extract %43[0, 0, 0] : f32 from vector<1x1x1xf32>
    %45 = arith.mulf %40, %40 : vector<16x128xf32>
    %46 = vector.shape_cast %45 : vector<16x128xf32> to vector<1x16x128xf32>
    %cst_13 = arith.constant dense<0.000000e+00> : vector<1xf32>
    %47 = vector.multi_reduction <add>, %46, %cst_13 [1, 2] : vector<1x16x128xf32> to vector<1xf32>
    %48 = vector.shape_cast %47 : vector<1xf32> to vector<1x1x1xf32>
    %49 = vector.extract %48[0, 0, 0] : f32 from vector<1x1x1xf32>
    %cst_14 = arith.constant 2.048000e+03 : f32
    %50 = arith.divf %44, %cst_14 : f32
    %cst_15 = arith.constant 2.048000e+03 : f32
    %51 = arith.mulf %cst_15, %50 : f32
    %52 = arith.mulf %51, %50 : f32
    %53 = arith.subf %49, %52 : f32
    %cst_16 = arith.constant 2.048000e+03 : f32
    %cst_17 = arith.constant 1.000000e+00 : f32
    %54 = arith.subf %cst_16, %cst_17 : f32
    %55 = arith.divf %53, %54 : f32
    %56 = vector.broadcast %50 : f32 to vector<16x128xf32>
    %57 = arith.subf %40, %56 : vector<16x128xf32>
    %58 = math.rsqrt %55 : f32
    %59 = vector.broadcast %58 : f32 to vector<16x128xf32>
    %60 = arith.mulf %57, %59 : vector<16x128xf32>
    %61 = math.tanh %60 : vector<16x128xf32>
    %62 = vector.broadcast %1 : f32 to vector<16x128xf32>
    %63 = arith.mulf %62, %61 : vector<16x128xf32>
    %64 = math.tanh %23 : vector<16x128xf32>
    %65 = vector.broadcast %2 : f32 to vector<16x128xf32>
    %66 = arith.mulf %65, %64 : vector<16x128xf32>
    %cst_18 = arith.constant 1.000000e+00 : f32
    %67 = vector.broadcast %cst_18 : f32 to vector<16x128xf32>
    %68 = arith.addf %67, %66 : vector<16x128xf32>
    %69 = arith.mulf %23, %68 : vector<16x128xf32>
    %70 = arith.addf %69, %63 : vector<16x128xf32>
    %c0_19 = arith.constant 0 : index
    %c0_20 = arith.constant 0 : index
    %71 = vector.load %arg2[%c0_19, %c0_20] : memref<16x128xf32, #tpu.memory_space<vmem>>, vector<16x128xf32>
    tpu.vector_store %arg2[%c0_19, %c0_20], %70 {strides = array<i32>} : memref<16x128xf32, #tpu.memory_space<vmem>>, vector<16x128xf32>,
    return
  }
}

</mosaic_0001>

<llo_original>
// kernel: tpu_custom_call.1
$region0: #{tpu_custom_call.1}
  #allocation0 [shape = 'u32[]', space=smem, size = 0x4, offset = 0x4, fixed_abs, tag = 'smem constant byte address 0x4 - core index']
  #allocation1 [shape = 'u32[144,128]{1,0:T(1,128)}', space=vmem, size = 0x12000, scoped, tag = 'internal scratch']
  %s0 = inlined_call_operand.hbm [shape: f32[3], index: 0, kind: input, shape index: {}]
  %s1 = inlined_call_operand.hbm [shape: f32[16,128], index: 1, kind: input, shape index: {}]
  %s2 = inlined_call_operand.hbm [shape: f32[16,128], index: 2, kind: output, shape index: {}]
  %s3 = sld [smem:[#allocation0]]
  $region26: #{tpu_custom_call.1} parent=0
    _
  %s5 = ssub.s32 1, %s3
  %s6 = scalar_select 0, %s5, %s3
  $region1: #{tpu_custom_call.1} parent=0
    #allocation2 [shape = 'u8[512]{0}', space=smem, size = 0x200, scoped, tag = 'input window, operand 0, single buffered']
    #allocation3 [shape = 's32[1]{0}', space=sflag, size = 0x4, scoped, tag = 'scoped memory for tpu_custom_call.1']
    #allocation4 [shape = 's32[1]{0}', space=sflag, size = 0x4, scoped, tag = 'scoped memory for tpu_custom_call.1']
    #allocation5 [shape = 's32[1]{0}', space=sflag, size = 0x4, scoped, tag = 'scoped memory for tpu_custom_call.1']
    #allocation6 [shape = 'u8[8192]{0}', space=vmem, size = 0x2000, scoped, tag = 'input window, operand 1, single buffered']
    #allocation7 [shape = 'u8[8192]{0}', space=vmem, size = 0x2000, scoped, tag = 'output window, operand 0, single buffered']
    %7 = vsyncpa [#allocation5], 0
    %8 = vsyncpa [#allocation3], 0
    %9 = vsyncpa [#allocation4], 0
    // Predicated region
    $region2: #{tpu_custom_call.1} parent=1 // pred_check
      _
    $region3: #{tpu_custom_call.1} parent=1 // pred_check_branch
      %11 = sbr.rel (0) target = $region5
    $region4: #{tpu_custom_call.1} parent=1 // pred_region
      %s13 = ssub.s32 16, 16
      %14 = vsyncadd [#allocation5], %s13
      %17 = dma.hbm_to_smem %s0, 16, [#allocation2], [#allocation5]
    $region5: #{tpu_custom_call.1} parent=1 // pred_fallthru
      _
    // Predicated region
    $region6: #{tpu_custom_call.1} parent=1 // pred_check
      _
    $region7: #{tpu_custom_call.1} parent=1 // pred_check_branch
      %19 = sbr.rel (0) target = $region9
    $region8: #{tpu_custom_call.1} parent=1 // pred_region
      %s21 = ssub.s32 256, 256
      %22 = vsyncadd [#allocation3], %s21
      %s23 = sshll.u32 [#allocation6], 4
      %s24 = int_to_ptr.vmem [resolvable:$true] %s23
      %29 = dma.hbm_to_vmem [thread:$0]  %s1, 256, %s24, [#allocation3], 128, 128, 8
    $region9: #{tpu_custom_call.1} parent=1 // pred_fallthru
      _
    // Predicated region
    $region10: #{tpu_custom_call.1} parent=1 // pred_check
      _
    $region11: #{tpu_custom_call.1} parent=1 // pred_check_branch
      %31 = sbr.rel (0) target = $region13
    $region12: #{tpu_custom_call.1} parent=1 // pred_region
      %32 = dma.done [#allocation5], 16
    $region13: #{tpu_custom_call.1} parent=1 // pred_fallthru
      _
    // Predicated region
    $region14: #{tpu_custom_call.1} parent=1 // pred_check
      _
    $region15: #{tpu_custom_call.1} parent=1 // pred_check_branch
      %34 = sbr.rel (0) target = $region17
    $region16: #{tpu_custom_call.1} parent=1 // pred_region
      %35 = dma.done [#allocation3], 256
    $region17: #{tpu_custom_call.1} parent=1 // pred_fallthru
      _
    %36 = sfence
    %s37 = sld [smem:[#allocation2]]
    %s38 = sld [smem:[#allocation2 + $0x1]]
    %s39 = sld [smem:[#allocation2 + $0x2]]
    %v40 = vld [vmem:[#allocation6] sm:$0xff]
    %v41 = vld [vmem:[#allocation6 + $0x8] sm:$0xff]
    %v42 = vadd.f32 %v40, %v41
    %43 = vadd.xlane.f32.xlu0 %v42
    %v44 = vpop.xlane.xlu0 %43
    %v45 = vrot.slane %v44, 4
    %v46 = vadd.f32 %v44, %v45
    %v47 = vrot.slane %v46, 2
    %v48 = vadd.f32 %v46, %v47
    %v49 = vrot.slane %v48, 1
    %v50 = vadd.f32 %v48, %v49
    %s51 = vtos %v50
    %v52 = vmul.f32 %v40, %v40
    %v53 = vmul.f32 %v41, %v41
    %v54 = vadd.f32 %v52, %v53
    %55 = vadd.xlane.f32.xlu0 %v54
    %v56 = vpop.xlane.xlu0 %55
    %v57 = vrot.slane %v56, 4
    %v58 = vadd.f32 %v56, %v57
    %v59 = vrot.slane %v58, 2
    %v60 = vadd.f32 %v58, %v59
    %v61 = vrot.slane %v60, 1
    %v62 = vadd.f32 %v60, %v61
    %s63 = vtos %v62
    %v64 = vrcp.pop 2048.0
    %s65 = vtos %v64
    %s66 = smul.f32 %s51, %s65
    %s67 = smul.f32 %s66, 2048.0
    %s68 = smul.f32 %s67, %s66
    %s69 = ssub.f32 %s63, %s68
    %v70 = vrcp.pop 2047.0
    %s71 = vtos %v70
    %s72 = smul.f32 %s69, %s71
    %v73 = vstv %s66
    %v74 = vsub.f32 %v40, %v73
    %v75 = vsub.f32 %v41, %v73
    %v76 = vstv %s72
    %v77 = vrsqrt.pop %v76
    %s78 = vtos %v77
    %v79 = vstv %s78
    %v80 = vmul.f32 %v74, %v79
    %v81 = vmul.f32 %v75, %v79
    %v82 = vmul.f32 %v80, 0.5
    %v83 = vmul.f32 %v81, 0.5
    %v84 = vtanh.pop %v82
    %v85 = vtanh.pop %v83
    %v86 = vadd.f32 %v84, 1.0
    %v87 = vadd.f32 %v85, 1.0
    %v88 = vmul.f32 %v86, 0.5
    %v89 = vmul.f32 %v87, 0.5
    %v90 = vstv %s37
    %v91 = vmul.f32 %v90, %v88
    %v92 = vmul.f32 %v90, %v89
    %v93 = vsub.f32 1.0, %v88
    %v94 = vsub.f32 1.0, %v89
    %v95 = vmul.f32 %v91, %v93
    %v96 = vmul.f32 %v92, %v94
    %v97 = vmul.f32 %v90, %v95
    %v98 = vmul.f32 %v90, %v96
    %v99 = vsub.f32 1.0, %v95
    %v100 = vsub.f32 1.0, %v96
    %v101 = vmul.f32 %v97, %v99
    %v102 = vmul.f32 %v98, %v100
    %v103 = vadd.f32 %v101, %v102
    %104 = vadd.xlane.f32.xlu0 %v103
    %v105 = vpop.xlane.xlu0 %104
    %v106 = vrot.slane %v105, 4
    %v107 = vadd.f32 %v105, %v106
    %v108 = vrot.slane %v107, 2
    %v109 = vadd.f32 %v107, %v108
    %v110 = vrot.slane %v109, 1
    %v111 = vadd.f32 %v109, %v110
    %s112 = vtos %v111
    %v113 = vmul.f32 %v101, %v101
    %v114 = vmul.f32 %v102, %v102
    %v115 = vadd.f32 %v113, %v114
    %116 = vadd.xlane.f32.xlu0 %v115
    %v117 = vpop.xlane.xlu0 %116
    %v118 = vrot.slane %v117, 4
    %v119 = vadd.f32 %v117, %v118
    %v120 = vrot.slane %v119, 2
    %v121 = vadd.f32 %v119, %v120
    %v122 = vrot.slane %v121, 1
    %v123 = vadd.f32 %v121, %v122
    %s124 = vtos %v123
    %v125 = vrcp.pop 2048.0
    %s126 = vtos %v125
    %s127 = smul.f32 %s112, %s126
    %s128 = smul.f32 %s127, 2048.0
    %s129 = smul.f32 %s128, %s127
    %s130 = ssub.f32 %s124, %s129
    %v131 = vrcp.pop 2047.0
    %s132 = vtos %v131
    %s133 = smul.f32 %s130, %s132
    %v134 = vstv %s127
    %v135 = vsub.f32 %v101, %v134
    %v136 = vsub.f32 %v102, %v134
    %v137 = vstv %s133
    %v138 = vrsqrt.pop %v137
    %s139 = vtos %v138
    %v140 = vstv %s139
    %v141 = vmul.f32 %v135, %v140
    %v142 = vmul.f32 %v136, %v140
    %v143 = vtanh.pop %v141
    %v144 = vtanh.pop %v142
    %v145 = vstv %s38
    %v146 = vmul.f32 %v145, %v143
    %v147 = vmul.f32 %v145, %v144
    %v148 = vtanh.pop %v80
    %v149 = vtanh.pop %v81
    %v150 = vstv %s39
    %v151 = vmul.f32 %v150, %v148
    %v152 = vmul.f32 %v150, %v149
    %v153 = vadd.f32 %v151, 1.0
    %v154 = vadd.f32 %v152, 1.0
    %v155 = vmul.f32 %v80, %v153
    %v156 = vmul.f32 %v81, %v154
    %v157 = vadd.f32 %v155, %v146
    %v158 = vadd.f32 %v156, %v147
    %159 = vst [vmem:[#allocation7] sm:$0xff] %v157
    %160 = vst [vmem:[#allocation7 + $0x8] sm:$0xff] %v158
    // Predicated region
    $region18: #{tpu_custom_call.1} parent=1 // pred_check
      _
    $region19: #{tpu_custom_call.1} parent=1 // pred_check_branch
      %162 = sbr.rel (0) target = $region21
    $region20: #{tpu_custom_call.1} parent=1 // pred_region
      %s164 = ssub.s32 256, 256
      %165 = vsyncadd [#allocation4], %s164
      %s166 = sshll.u32 [#allocation7], 4
      %s167 = int_to_ptr.vmem [resolvable:$true] %s166
      %172 = dma.vmem_to_hbm [thread:$0]  %s167, 256, %s2, [#allocation4], 128, 128, 8
    $region21: #{tpu_custom_call.1} parent=1 // pred_fallthru
      _
    // Predicated region
    $region22: #{tpu_custom_call.1} parent=1 // pred_check
      _
    $region23: #{tpu_custom_call.1} parent=1 // pred_check_branch
      %174 = sbr.rel (0) target = $region25
    $region24: #{tpu_custom_call.1} parent=1 // pred_region
      %175 = dma.done [#allocation4], 256
    $region25: #{tpu_custom_call.1} parent=1 // pred_fallthru
      _
    %176 = vsyncpa [#allocation3], 1
    %177 = vsyncpa [#allocation4], 1
    %178 = vsyncpa [#allocation5], 1

</llo_original>
